<compile_context>
chip_gen: v7x
topology: tpu7x:2x2x1
jax: 0.10.0
libtpu: 0.0.40
codegen_flags: <defaults>
</compile_context>

<pallas_src>
import functools

import jax
import jax.numpy as jnp
from jax import lax
from jax.experimental import pallas as pl
from jax.experimental.pallas import tpu as pltpu


def _vq_kernel(x_ref, e_ref, q_ref, idx_ref, sse_ref):
    """One grid step processes a (C, T) channels-in-sublane tile."""
    x = x_ref[...]                                    # (C, T)  f32 input tile
    e = e_ref[...]                                    # (K, C)  f32 codebook (resident)

    C, T = x.shape
    K = e.shape[0]

    # Squared norms.  |e|^2 is recomputed in-kernel (K x C ~= 1 KiB, cheaper
    # than a third HBM->VMEM input stream).
    e2 = jnp.sum(e * e, axis=1, keepdims=True)                            # (K, 1)
    x2 = jnp.sum(x * x, axis=0, keepdims=True)                            # (1, T)

    # Squared-L2 distances to every codebook entry: (K, C) @ (C, T) on the MXU.
    dots = jnp.dot(e, x, preferred_element_type=jnp.float32)              # (K, T)
    dist = e2 + x2 - 2.0 * dots                                           # (K, T)

    # argmax(-dist) over the code (sublane) axis with first-index tie-break,
    # matching torch.max(-distances, dim=1)[1].
    neg = -dist
    m = jnp.max(neg, axis=0, keepdims=True)                               # (1, T)
    iota_k = lax.broadcasted_iota(jnp.int32, (K, T), 0)                   # (K, T)
    idx = jnp.min(jnp.where(neg == m, iota_k, K), axis=0, keepdims=True)  # (1, T)
    idx_ref[...] = idx.astype(jnp.int32)                                  # lane-dense store

    # One-hot gather of codebook rows: E^T (C,K) @ onehot (K,T) -> (C,T) on MXU.
    onehot = (iota_k == idx).astype(jnp.float32)                          # (K, T)
    q = lax.dot_general(e, onehot, (((0,), (0,)), ((), ())),
                        preferred_element_type=jnp.float32)               # (C, T)
    q_ref[...] = q                                                        # lane-dense store

    # Per-column partial sum of squared errors (reduced over the small C
    # sublane axis on the XLU); the wrapper finishes the reduction.
    diff = q - x
    sse_ref[...] = jnp.sum(diff * diff, axis=0, keepdims=True)            # (1, T)


@functools.partial(jax.jit, static_argnames=("commitment_cost",))
def vq_ema_forward(x_nchw, embedding, commitment_cost=0.25):
    """Eval-mode forward of VectorQuantizerEMA (dimensions=2).

    Returns (loss, quantized_nchw, perplexity).
    """
    B, C, H, W = x_nchw.shape
    K, Cd = embedding.shape
    assert Cd == C, "embedding_dim must match channel dim"

    HW = H * W
    # TODO(synk): pad + mask the last spatial tile for HW not divisible by 128.
    assert HW % 128 == 0, "H*W must be a multiple of 128 for this tiling"

    # Fat spatial tile (multiple of 128) to amortize per-grid-step overhead.
    T = HW
    if HW > 4096:
        t = 4096
        while t >= 128 and HW % t:
            t -= 128
        T = t
    nt = HW // T

    x = x_nchw.astype(jnp.float32)
    x_flat = x.reshape(B, C, HW)          # free reshape, stays in NCHW order
    emb = embedding.astype(jnp.float32)   # (K, C)

    q_flat, idx, sse_part = pl.pallas_call(
        _vq_kernel,
        out_shape=(
            jax.ShapeDtypeStruct((B, C, HW), jnp.float32),   # quantized (N, C, HW)
            jax.ShapeDtypeStruct((B, 1, HW), jnp.int32),     # encoding indices
            jax.ShapeDtypeStruct((B, 1, HW), jnp.float32),   # per-column SSE partials
        ),
        grid=(B, nt),
        in_specs=[
            pl.BlockSpec((None, C, T), lambda b, j: (b, 0, j)),   # input tile
            pl.BlockSpec((K, C), lambda b, j: (0, 0)),            # full codebook (resident)
        ],
        out_specs=(
            pl.BlockSpec((None, C, T), lambda b, j: (b, 0, j)),
            pl.BlockSpec((None, 1, T), lambda b, j: (b, 0, j)),
            pl.BlockSpec((None, 1, T), lambda b, j: (b, 0, j)),
        ),
        compiler_params=pltpu.CompilerParams(
            dimension_semantics=("parallel", "parallel")),
    )(x_flat, emb)

    N = B * HW

    # loss = commitment_cost * mse_loss(quantized.detach(), inputs)
    loss = commitment_cost * jnp.sum(sse_part) / jnp.float32(N * C)

    # Back to NCHW (free reshape, no transpose).
    quantized = q_flat.reshape(B, C, H, W)

    # Straight-through estimator (numerically identical to `quantized`).
    quantized = x + lax.stop_gradient(quantized - x)

    # Perplexity (torch.histc over integer indices == bincount here).
    avg_probs = jnp.bincount(idx.reshape(-1), length=K).astype(jnp.float32) / jnp.float32(N)
    perplexity = jnp.exp(-jnp.sum(avg_probs * jnp.log(avg_probs + 1e-10)))

    # TODO(synk): EMA codebook update (training-only buffer mutation) is not
    # part of the eval forward pass and is omitted here.
    return loss, quantized, perplexity


def _reference_forward(x_nchw, embedding, commitment_cost=0.25):
    """Plain-JAX reference mirroring the PyTorch module (eval mode)."""
    B, C, H, W = x_nchw.shape
    x = x_nchw.astype(jnp.float32)
    emb = embedding.astype(jnp.float32)
    flat = jnp.transpose(x, (0, 2, 3, 1)).reshape(-1, C)
    dist = (jnp.sum(flat**2, axis=1, keepdims=True)
            + jnp.sum(emb**2, axis=1)[None, :]
            - 2.0 * flat @ emb.T)
    idx = jnp.argmax(-dist, axis=1)
    q = emb[idx].reshape(B, H, W, C).transpose(0, 3, 1, 2)
    loss = commitment_cost * jnp.mean((q - x) ** 2)
    K = emb.shape[0]
    avg = jnp.bincount(idx, length=K).astype(jnp.float32) / jnp.float32(idx.size)
    perp = jnp.exp(-jnp.sum(avg * jnp.log(avg + 1e-10)))
    return loss, q, perp


if __name__ == "__main__":
    # Module hyper-params: dimensions=2, num_embeddings=32, embedding_dim=8.
    B, C, H, W = 2, 8, 16, 16
    K = 32

    key = jax.random.PRNGKey(0)
    kx, ke = jax.random.split(key)
    x = jax.random.normal(kx, (B, C, H, W), dtype=jnp.float32)
    # nn.Embedding default init: N(0, 1).
    embedding = jax.random.normal(ke, (K, C), dtype=jnp.float32)

    loss, quantized, perplexity = vq_ema_forward(x, embedding)
    jax.block_until_ready((loss, quantized, perplexity))

    # Lightweight correctness check against a plain-JAX reference.
    ref_loss, ref_q, ref_perp = _reference_forward(x, embedding)
    assert jnp.allclose(loss, ref_loss, atol=1e-5, rtol=1e-5), (loss, ref_loss)
    assert jnp.allclose(quantized, ref_q, atol=1e-5, rtol=1e-5)
    assert jnp.allclose(perplexity, ref_perp, atol=1e-4, rtol=1e-4), (perplexity, ref_perp)

    print("KERNEL_OK")
</pallas_src>

<mosaic_0001>
module attributes {stable_mosaic.version = 11 : i64} {
  func.func private @main(%arg0: i32) attributes {dimension_semantics = [#tpu.dimension_semantics<core_parallel>], iteration_bounds = array<i64: 2>, tpu.core_type = #tpu.core_type<sc_scalar_subcore>, window_params = []} {
    return
  }
}

module attributes {stable_mosaic.version = 11 : i64} {
  func.func private @main(%arg0: i32) attributes {dimension_semantics = [#tpu.dimension_semantics<core_parallel>], iteration_bounds = array<i64: 2>, tpu.core_type = #tpu.core_type<sc_scalar_subcore>, window_params = []} {
    return
  }
}

module attributes {stable_mosaic.version = 11 : i64} {
  func.func @_vq_kernel(%arg0: i32, %arg1: i32, %arg2: memref<1x8x256xf32, #tpu.memory_space<vmem>>, %arg3: memref<32x8xf32, #tpu.memory_space<vmem>>, %arg4: memref<1x8x256xf32, #tpu.memory_space<vmem>>, %arg5: memref<1x1x256xi32, #tpu.memory_space<vmem>>, %arg6: memref<1x1x256xf32, #tpu.memory_space<vmem>>) attributes {dimension_semantics = [#tpu.dimension_semantics<parallel>, #tpu.dimension_semantics<parallel>], iteration_bounds = array<i64: 2, 1>, scalar_prefetch = 0 : i64, scratch_operands = 0 : i64, tpu.core_type = #tpu.core_type<tc>, window_params = [{transform_indices = @transform_0, window_bounds = array<i64: 1, 8, 256>}, {pipeline_mode = #tpu.pipeline_mode<synchronous>, transform_indices = @transform_1, window_bounds = array<i64: 32, 8>}, {transform_indices = @transform_2, window_bounds = array<i64: 1, 8, 256>}, {transform_indices = @transform_3, window_bounds = array<i64: 1, 1, 256>}, {transform_indices = @transform_4, window_bounds = array<i64: 1, 1, 256>}]} {
    %c0 = arith.constant 0 : index
    %c0_0 = arith.constant 0 : index
    %c0_1 = arith.constant 0 : index
    %0 = vector.load %arg2[%c0, %c0_0, %c0_1] : memref<1x8x256xf32, #tpu.memory_space<vmem>>, vector<1x8x256xf32>
    %1 = vector.shape_cast %0 : vector<1x8x256xf32> to vector<8x256xf32>
    %c0_2 = arith.constant 0 : index
    %c0_3 = arith.constant 0 : index
    %2 = vector.load %arg3[%c0_2, %c0_3] : memref<32x8xf32, #tpu.memory_space<vmem>>, vector<32x8xf32>
    %3 = arith.mulf %2, %2 : vector<32x8xf32>
    %cst = arith.constant dense<0.000000e+00> : vector<32xf32>
    %4 = vector.multi_reduction <add>, %3, %cst [1] : vector<32x8xf32> to vector<32xf32>
    %5 = vector.shape_cast %4 : vector<32xf32> to vector<32x1xf32>
    %6 = arith.mulf %1, %1 : vector<8x256xf32>
    %cst_4 = arith.constant dense<0.000000e+00> : vector<256xf32>
    %7 = vector.multi_reduction <add>, %6, %cst_4 [0] : vector<8x256xf32> to vector<256xf32>
    %8 = vector.shape_cast %7 : vector<256xf32> to vector<1x256xf32>
    %cst_5 = arith.constant dense<0.000000e+00> : vector<32x256xf32>
    %9 = tpu.matmul %2, %1, %cst_5 {dimension_numbers = #tpu.dot_dimension_numbers<[1], [0], [0], [1], [0, 0, 1, 1], [], []>} : vector<32x8xf32>, vector<8x256xf32>, vector<32x256xf32> -> vector<32x256xf32>
    %10 = vector.broadcast %5 : vector<32x1xf32> to vector<32x256xf32>
    %11 = vector.broadcast %8 : vector<1x256xf32> to vector<32x256xf32>
    %12 = arith.addf %10, %11 : vector<32x256xf32>
    %cst_6 = arith.constant 2.000000e+00 : f32
    %13 = vector.broadcast %cst_6 : f32 to vector<32x256xf32>
    %14 = arith.mulf %13, %9 : vector<32x256xf32>
    %15 = arith.subf %12, %14 : vector<32x256xf32>
    %cst_7 = arith.constant 0.000000e+00 : f32
    %16 = vector.broadcast %cst_7 : f32 to vector<32x256xf32>
    %17 = arith.subf %16, %15 : vector<32x256xf32>
    %cst_8 = arith.constant dense<0xFF800000> : vector<256xf32>
    %18 = vector.multi_reduction <maximumf>, %17, %cst_8 [0] : vector<32x256xf32> to vector<256xf32>
    %19 = vector.shape_cast %18 : vector<256xf32> to vector<1x256xf32>
    %20 = tpu.iota {dimensions = array<i32: 0>} : vector<32x256xi32>
    %21 = vector.broadcast %19 : vector<1x256xf32> to vector<32x256xf32>
    %22 = arith.cmpf oeq, %17, %21 : vector<32x256xf32>
    %c32_i32 = arith.constant 32 : i32
    %23 = vector.broadcast %c32_i32 : i32 to vector<32x256xi32>
    %24 = arith.select %22, %20, %23 : vector<32x256xi1>, vector<32x256xi32>
    %cst_9 = arith.constant dense<2147483647> : vector<256xi32>
    %25 = vector.multi_reduction <minsi>, %24, %cst_9 [0] : vector<32x256xi32> to vector<256xi32>
    %26 = vector.shape_cast %25 : vector<256xi32> to vector<1x256xi32>
    %c0_10 = arith.constant 0 : index
    %c0_11 = arith.constant 0 : index
    %c0_12 = arith.constant 0 : index
    %27 = vector.load %arg5[%c0_10, %c0_11, %c0_12] : memref<1x1x256xi32, #tpu.memory_space<vmem>>, vector<1x1x256xi32>
    %28 = vector.shape_cast %27 : vector<1x1x256xi32> to vector<1x256xi32>
    %29 = vector.shape_cast %26 : vector<1x256xi32> to vector<1x1x256xi32>
    tpu.vector_store %arg5[%c0_10, %c0_11, %c0_12], %29 {strides = array<i32>} : memref<1x1x256xi32, #tpu.memory_space<vmem>>, vector<1x1x256xi32>,
    %30 = vector.broadcast %26 : vector<1x256xi32> to vector<32x256xi32>
    %31 = arith.cmpi eq, %20, %30 : vector<32x256xi32>
    %32 = arith.extui %31 : vector<32x256xi1> to vector<32x256xi32>
    %33 = arith.sitofp %32 : vector<32x256xi32> to vector<32x256xf32>
    %cst_13 = arith.constant dense<0.000000e+00> : vector<8x256xf32>
    %34 = tpu.matmul %2, %33, %cst_13 {dimension_numbers = #tpu.dot_dimension_numbers<[0], [0], [1], [1], [0, 1, 1, 1], [], []>} : vector<32x8xf32>, vector<32x256xf32>, vector<8x256xf32> -> vector<8x256xf32>
    %c0_14 = arith.constant 0 : index
    %c0_15 = arith.constant 0 : index
    %c0_16 = arith.constant 0 : index
    %35 = vector.load %arg4[%c0_14, %c0_15, %c0_16] : memref<1x8x256xf32, #tpu.memory_space<vmem>>, vector<1x8x256xf32>
    %36 = vector.shape_cast %35 : vector<1x8x256xf32> to vector<8x256xf32>
    %37 = vector.shape_cast %34 : vector<8x256xf32> to vector<1x8x256xf32>
    tpu.vector_store %arg4[%c0_14, %c0_15, %c0_16], %37 {strides = array<i32>} : memref<1x8x256xf32, #tpu.memory_space<vmem>>, vector<1x8x256xf32>,
    %38 = arith.subf %34, %1 : vector<8x256xf32>
    %39 = arith.mulf %38, %38 : vector<8x256xf32>
    %cst_17 = arith.constant dense<0.000000e+00> : vector<256xf32>
    %40 = vector.multi_reduction <add>, %39, %cst_17 [0] : vector<8x256xf32> to vector<256xf32>
    %41 = vector.shape_cast %40 : vector<256xf32> to vector<1x256xf32>
    %c0_18 = arith.constant 0 : index
    %c0_19 = arith.constant 0 : index
    %c0_20 = arith.constant 0 : index
    %42 = vector.load %arg6[%c0_18, %c0_19, %c0_20] : memref<1x1x256xf32, #tpu.memory_space<vmem>>, vector<1x1x256xf32>
    %43 = vector.shape_cast %42 : vector<1x1x256xf32> to vector<1x256xf32>
    %44 = vector.shape_cast %41 : vector<1x256xf32> to vector<1x1x256xf32>
    tpu.vector_store %arg6[%c0_18, %c0_19, %c0_20], %44 {strides = array<i32>} : memref<1x1x256xf32, #tpu.memory_space<vmem>>, vector<1x1x256xf32>,
    return
  }
  func.func @transform_0(%arg0: i32, %arg1: i32) -> (i32, i32, i32) {
    %c0_i32 = arith.constant 0 : i32
    %c0_i32_0 = arith.constant 0 : i32
    return %arg0, %c0_i32, %arg1 : i32, i32, i32
  }
  func.func @transform_1(%arg0: i32, %arg1: i32) -> (i32, i32) {
    %c0_i32 = arith.constant 0 : i32
    %c0_i32_0 = arith.constant 0 : i32
    %c0_i32_1 = arith.constant 0 : i32
    return %c0_i32, %c0_i32_0 : i32, i32
  }
  func.func @transform_2(%arg0: i32, %arg1: i32) -> (i32, i32, i32) {
    %c0_i32 = arith.constant 0 : i32
    %c0_i32_0 = arith.constant 0 : i32
    return %arg0, %c0_i32, %arg1 : i32, i32, i32
  }
  func.func @transform_3(%arg0: i32, %arg1: i32) -> (i32, i32, i32) {
    %c0_i32 = arith.constant 0 : i32
    %c0_i32_0 = arith.constant 0 : i32
    return %arg0, %c0_i32, %arg1 : i32, i32, i32
  }
  func.func @transform_4(%arg0: i32, %arg1: i32) -> (i32, i32, i32) {
    %c0_i32 = arith.constant 0 : i32
    %c0_i32_0 = arith.constant 0 : i32
    return %arg0, %c0_i32, %arg1 : i32, i32, i32
  }
}

</mosaic_0001>

<llo_original>
// kernel: vq_ema_forward.1
$region0: #{vq_ema_forward.1}
  #allocation0 [shape = 'u32[]', space=smem, size = 0x4, offset = 0x4, fixed_abs, tag = 'smem constant byte address 0x4 - core index']
  #allocation1 [shape = 'u32[144,128]{1,0:T(1,128)}', space=vmem, size = 0x12000, scoped, tag = 'internal scratch']
  %s0 = inlined_call_operand.vmem [shape: f32[2,8,256], index: 0, kind: input, shape index: {}]
  %s1 = inlined_call_operand.vmem [shape: f32[32,8], index: 1, kind: input, shape index: {}]
  %s2 = inlined_call_operand.vmem [shape: f32[2,8,256], index: 2, kind: output, shape index: {0}]
  %s3 = inlined_call_operand.vmem [shape: s32[2,1,256], index: 3, kind: output, shape index: {1}]
  %s4 = inlined_call_operand.vmem [shape: f32[2,1,256], index: 4, kind: output, shape index: {2}]
  %5 = xla_tuple %s2, %s3, %s4
  %s6 = sld [smem:[#allocation0]]
  $region57: #{vq_ema_forward.1} parent=0
    _
  %s8 = ssub.s32 1, %s6
  %s9 = scalar_select 0, %s8, %s6
  loop: start=0, step=1, limit=4
  $region2: #{vq_ema_forward.1} parent=0 // loop_pre_header
    _
  $region3: #{vq_ema_forward.1} parent=0 // loop_header
    %s11 = sphi 0, %s15
    %p12 = scmp.ge.s32.totalorder %s11, 4
    %s18 = sphi 0, %s30
    %s19 = sphi 0, %s26
    %s20 = sphi 0, %s18
    %s21 = sphi 0, %s19
    %s22 = sphi 0, %s20
    %s23 = sphi 0, %s21
    %s35 = sphi 0, %s37
    %s38 = sphi 0, %s35
    %s39 = sphi 0, %s38
    %s55 = sphi 0, %s39
    %s59 = sphi 0, %s59
    %s61 = sphi 0, %s59
    %s62 = sphi 0, %s61
    %s76 = sphi 0, %s62
    %s84 = sphi 0, %s86
    %s87 = sphi 0, %s84
    %s88 = sphi 0, %s87
    %s104 = sphi 0, %s88
    %s112 = sphi 0, %s114
    %s115 = sphi 0, %s112
    %s116 = sphi 0, %s115
    %s132 = sphi 0, %s116
    %s140 = sphi 0, %s142
    %s143 = sphi 0, %s140
    %s144 = sphi 0, %s143
    %s160 = sphi 0, %s144
  $region4: #{vq_ema_forward.1} parent=0 // loop_header_branch
    %14 = sbr.rel (%p12) target = $region8
  $region5: #{vq_ema_forward.1} parent=0 // loop_body
    %s16 = ssub.s32 %s11, 1
    %s17 = ssub.s32 %s11, 2
    %s24 = sadd.s32 1, %s19
    %p25 = scmp.ge.s32.totalorder %s24, 1
    %s26 = scalar_select %p25, 0, %s24
    %s27 = sadd.s32 1, %s18
    %s28 = scalar_select %p25, %s27, %s18
    %p29 = scmp.ge.s32.totalorder %s28, 2
    %s30 = scalar_select %p29, 0, %s28
    %s31 = ssub.s32 %s18, %s30
    %s32 = ssub.s32 %s19, %s26
    %s33 = sor.u32 %s31, %s32
    %p34 = scmp.eq.s32.totalorder %s33, 0
    %s36 = sadd.s32 %s35, 1
    %s37 = scalar_select %p34, %s35, %s36
    %p40 = pneg %p34
    %p41 = scmp.eq.s32.totalorder %s11, 1
    %p42 = por %p40, %p41
    %p43 = scmp.ne.s32.totalorder %s35, %s38
    %p44 = scmp.eq.s32.totalorder %s11, 0
    %p45 = por %p43, %p44
    %p46 = scmp.ne.s32.totalorder %s35, %s38
    %p47 = scmp.eq.s32.totalorder %s16, 1
    %p48 = por %p46, %p47
    %p49 = scmp.ne.s32.totalorder %s38, %s39
    %p50 = scmp.eq.s32.totalorder %s16, 0
    %p51 = por %p49, %p50
    %p52 = scmp.ne.s32.totalorder %s38, %s39
    %p53 = scmp.eq.s32.totalorder %s17, 1
    %p54 = por %p52, %p53
    %p56 = scmp.ne.s32.totalorder %s39, %s55
    %p57 = scmp.eq.s32.totalorder %s17, 0
    %p58 = por %p56, %p57
    %s60 = sadd.s32 %s59, 1
    %p63 = scmp.eq.s32.totalorder %s11, 1
    %p64 = scmp.ne.s32.totalorder %s59, %s61
    %p65 = scmp.eq.s32.totalorder %s11, 0
    %p66 = por %p64, %p65
    %p67 = scmp.ne.s32.totalorder %s59, %s61
    %p68 = scmp.eq.s32.totalorder %s16, 1
    %p69 = por %p67, %p68
    %p70 = scmp.ne.s32.totalorder %s61, %s62
    %p71 = scmp.eq.s32.totalorder %s16, 0
    %p72 = por %p70, %p71
    %p73 = scmp.ne.s32.totalorder %s61, %s62
    %p74 = scmp.eq.s32.totalorder %s17, 1
    %p75 = por %p73, %p74
    %p77 = scmp.ne.s32.totalorder %s62, %s76
    %p78 = scmp.eq.s32.totalorder %s17, 0
    %p79 = por %p77, %p78
    %s80 = ssub.s32 %s18, %s30
    %s81 = ssub.s32 %s19, %s26
    %s82 = sor.u32 %s80, %s81
    %p83 = scmp.eq.s32.totalorder %s82, 0
    %s85 = sadd.s32 %s84, 1
    %s86 = scalar_select %p83, %s84, %s85
    %p89 = pneg %p83
    %p90 = scmp.eq.s32.totalorder %s11, 1
    %p91 = por %p89, %p90
    %p92 = scmp.ne.s32.totalorder %s84, %s87
    %p93 = scmp.eq.s32.totalorder %s11, 0
    %p94 = por %p92, %p93
    %p95 = scmp.ne.s32.totalorder %s84, %s87
    %p96 = scmp.eq.s32.totalorder %s16, 1
    %p97 = por %p95, %p96
    %p98 = scmp.ne.s32.totalorder %s87, %s88
    %p99 = scmp.eq.s32.totalorder %s16, 0
    %p100 = por %p98, %p99
    %p101 = scmp.ne.s32.totalorder %s87, %s88
    %p102 = scmp.eq.s32.totalorder %s17, 1
    %p103 = por %p101, %p102
    %p105 = scmp.ne.s32.totalorder %s88, %s104
    %p106 = scmp.eq.s32.totalorder %s17, 0
    %p107 = por %p105, %p106
    %s108 = ssub.s32 %s18, %s30
    %s109 = ssub.s32 %s19, %s26
    %s110 = sor.u32 %s108, %s109
    %p111 = scmp.eq.s32.totalorder %s110, 0
    %s113 = sadd.s32 %s112, 1
    %s114 = scalar_select %p111, %s112, %s113
    %p117 = pneg %p111
    %p118 = scmp.eq.s32.totalorder %s11, 1
    %p119 = por %p117, %p118
    %p120 = scmp.ne.s32.totalorder %s112, %s115
    %p121 = scmp.eq.s32.totalorder %s11, 0
    %p122 = por %p120, %p121
    %p123 = scmp.ne.s32.totalorder %s112, %s115
    %p124 = scmp.eq.s32.totalorder %s16, 1
    %p125 = por %p123, %p124
    %p126 = scmp.ne.s32.totalorder %s115, %s116
    %p127 = scmp.eq.s32.totalorder %s16, 0
    %p128 = por %p126, %p127
    %p129 = scmp.ne.s32.totalorder %s115, %s116
    %p130 = scmp.eq.s32.totalorder %s17, 1
    %p131 = por %p129, %p130
    %p133 = scmp.ne.s32.totalorder %s116, %s132
    %p134 = scmp.eq.s32.totalorder %s17, 0
    %p135 = por %p133, %p134
    %s136 = ssub.s32 %s18, %s30
    %s137 = ssub.s32 %s19, %s26
    %s138 = sor.u32 %s136, %s137
    %p139 = scmp.eq.s32.totalorder %s138, 0
    %s141 = sadd.s32 %s140, 1
    %s142 = scalar_select %p139, %s140, %s141
    %p145 = pneg %p139
    %p146 = scmp.eq.s32.totalorder %s11, 1
    %p147 = por %p145, %p146
    %p148 = scmp.ne.s32.totalorder %s140, %s143
    %p149 = scmp.eq.s32.totalorder %s11, 0
    %p150 = por %p148, %p149
    %p151 = scmp.ne.s32.totalorder %s140, %s143
    %p152 = scmp.eq.s32.totalorder %s16, 1
    %p153 = por %p151, %p152
    %p154 = scmp.ne.s32.totalorder %s143, %s144
    %p155 = scmp.eq.s32.totalorder %s16, 0
    %p156 = por %p154, %p155
    %p157 = scmp.ne.s32.totalorder %s143, %s144
    %p158 = scmp.eq.s32.totalorder %s17, 1
    %p159 = por %p157, %p158
    %p161 = scmp.ne.s32.totalorder %s144, %s160
    %p162 = scmp.eq.s32.totalorder %s17, 0
    %p163 = por %p161, %p162
    %p164 = scmp.le.s32.totalorder 1, %s11
    %p165 = scmp.lt.s32.totalorder %s11, 3
    %p166 = pnand %p164, %p165
    %p167 = pneg %p166
    // Predicated region
    $region9: #{vq_ema_forward.1} parent=5 // pred_check
      _
    $region10: #{vq_ema_forward.1} parent=5 // pred_check_branch
      %169 = sbr.rel (%p166) target = $region12
    $region11: #{vq_ema_forward.1} parent=5 // pred_region
      %s170 = ssub.s32 %s11, 1
      // Predicated region
      $region13: #{vq_ema_forward.1} parent=11 // pred_check
        %p171 = pneg %p72
      $region14: #{vq_ema_forward.1} parent=11 // pred_check_branch
        %173 = sbr.rel (%p171) target = $region16
      $region15: #{vq_ema_forward.1} parent=11 // pred_region
        _
      $region16: #{vq_ema_forward.1} parent=11 // pred_fallthru
        _
    $region12: #{vq_ema_forward.1} parent=5 // pred_fallthru
      _
    %p174 = scmp.lt.s32.totalorder %s11, 2
    // Predicated region
    $region17: #{vq_ema_forward.1} parent=5 // pred_check
      %p175 = pneg %p174
    $region18: #{vq_ema_forward.1} parent=5 // pred_check_branch
      %177 = sbr.rel (%p175) target = $region20
    $region19: #{vq_ema_forward.1} parent=5 // pred_region
      // Predicated region
      $region21: #{vq_ema_forward.1} parent=19 // pred_check
        %p178 = pneg %p45
      $region22: #{vq_ema_forward.1} parent=19 // pred_check_branch
        %180 = sbr.rel (%p178) target = $region24
      $region23: #{vq_ema_forward.1} parent=19 // pred_region
        %s181 = smul.u32 2, %s19
        %p182 = scmp.lt.s32.totalorder %s18, 1
        %s183 = scalar_select %p182, %s18, 1
        %p184 = scmp.lt.s32.totalorder %s181, 1
        %s185 = scalar_select %p184, %s181, 1
        %s186 = smul.addr %s183, 2
        %s187 = sadd.s32 %s185, %s186
        %s188 = smul.addr %s187, 8
        %s189 = scalar_lea.vmem %s0, %s188
        %s190 = smul.u32 2, %s19
      $region24: #{vq_ema_forward.1} parent=19 // pred_fallthru
        _
    $region20: #{vq_ema_forward.1} parent=5 // pred_fallthru
      _
    %p191 = scmp.le.s32.totalorder 1, %s11
    %p192 = scmp.lt.s32.totalorder %s11, 3
    %p193 = pnand %p191, %p192
    %p194 = pneg %p193
    // Predicated region
    $region25: #{vq_ema_forward.1} parent=5 // pred_check
      _
    $region26: #{vq_ema_forward.1} parent=5 // pred_check_branch
      %196 = sbr.rel (%p193) target = $region28
    $region27: #{vq_ema_forward.1} parent=5 // pred_region
      %s197 = ssub.s32 %s11, 1
      %s198 = smul.u32 2, %s21
      %p199 = scmp.lt.s32.totalorder %s20, 1
      %s200 = scalar_select %p199, %s20, 1
      %p201 = scmp.lt.s32.totalorder %s198, 1
      %s202 = scalar_select %p201, %s198, 1
      %s203 = smul.addr %s200, 2
      %s204 = sadd.s32 %s202, %s203
      %s205 = smul.addr %s204, 8
      %s206 = scalar_lea.vmem %s0, %s205
      %p207 = pneg %p51
      %p208 = pneg %p48
      %p209 = pneg %p72
      %p210 = pneg %p69
      %p211 = pneg %p100
      %p212 = pneg %p97
      %s213 = smul.u32 2, %s21
      %p214 = scmp.lt.s32.totalorder %s20, 1
      %s215 = scalar_select %p214, %s20, 1
      %p216 = scmp.lt.s32.totalorder %s213, 1
      %s217 = scalar_select %p216, %s213, 1
      %s218 = smul.addr %s215, 2
      %s219 = sadd.s32 %s217, %s218
      %s220 = smul.addr %s219, 8
      %s221 = scalar_lea.vmem %s2, %s220
      %p222 = pneg %p128
      %p223 = pneg %p125
      %s224 = smul.u32 2, %s21
      %p225 = scmp.lt.s32.totalorder %s20, 1
      %s226 = scalar_select %p225, %s20, 1
      %p227 = scmp.lt.s32.totalorder %s224, 1
      %s228 = scalar_select %p227, %s224, 1
      %s229 = smul.addr %s226, 2
      %s230 = sadd.s32 %s228, %s229
      %s231 = scalar_lea.vmem %s3, %s230
      %p232 = pneg %p156
      %p233 = pneg %p153
      %s234 = smul.u32 2, %s21
      %p235 = scmp.lt.s32.totalorder %s20, 1
      %s236 = scalar_select %p235, %s20, 1
      %p237 = scmp.lt.s32.totalorder %s234, 1
      %s238 = scalar_select %p237, %s234, 1
      %s239 = smul.addr %s236, 2
      %s240 = sadd.s32 %s238, %s239
      %s241 = scalar_lea.vmem %s4, %s240
      %s242 = smul.u32 2, %s21
      %p243 = scmp.lt.s32.totalorder %s20, 1
      %s244 = scalar_select %p243, %s20, 1
      %p245 = scmp.lt.s32.totalorder %s242, 1
      %s246 = scalar_select %p245, %s242, 1
      %s247 = smul.addr %s244, 2
      %s248 = sadd.s32 %s246, %s247
      %s249 = smul.addr %s248, 8
      %s250 = scalar_lea.vmem %s0, %s249
      %s251 = smul.u32 2, %s21
      %s252 = smul.u32 2, %s21
      %p253 = scmp.lt.s32.totalorder %s20, 1
      %s254 = scalar_select %p253, %s20, 1
      %p255 = scmp.lt.s32.totalorder %s252, 1
      %s256 = scalar_select %p255, %s252, 1
      %s257 = smul.addr %s254, 2
      %s258 = sadd.s32 %s256, %s257
      %s259 = smul.addr %s258, 8
      %s260 = scalar_lea.vmem %s2, %s259
      %s261 = smul.u32 2, %s21
      %s262 = smul.u32 2, %s21
      %p263 = scmp.lt.s32.totalorder %s20, 1
      %s264 = scalar_select %p263, %s20, 1
      %p265 = scmp.lt.s32.totalorder %s262, 1
      %s266 = scalar_select %p265, %s262, 1
      %s267 = smul.addr %s264, 2
      %s268 = sadd.s32 %s266, %s267
      %s269 = scalar_lea.vmem %s3, %s268
      %s270 = smul.u32 2, %s21
      %s271 = smul.u32 2, %s21
      %p272 = scmp.lt.s32.totalorder %s20, 1
      %s273 = scalar_select %p272, %s20, 1
      %p274 = scmp.lt.s32.totalorder %s271, 1
      %s275 = scalar_select %p274, %s271, 1
      %s276 = smul.addr %s273, 2
      %s277 = sadd.s32 %s275, %s276
      %s278 = scalar_lea.vmem %s4, %s277
      %s279 = smul.u32 2, %s21
      %v280 = vld [vmem:[%s250] sm:$0xff]
      %v281 = vld [vmem:[%s250 + $0x8] sm:$0xff]
      %v282 = vld [vmem:[%s1] sm:$0xff]
      %v283 = vld [vmem:[%s1 + $0x8] sm:$0xff]
      %v284 = vld [vmem:[%s1 + $0x10] sm:$0xff]
      %v285 = vld [vmem:[%s1 + $0x18] sm:$0xff]
      %v286 = vmul.f32 %v282, %v282
      %v287 = vmul.f32 %v283, %v283
      %v288 = vmul.f32 %v284, %v284
      %v289 = vmul.f32 %v285, %v285
      %vm290 = vcmask 64512
      %v291 = vsel %vm290, %v286, 0.0
      %292 = vadd.xlane.f32.xlu0 %v291
      %v293 = vpop.xlane.xlu0 %292
      %v294 = vsel %vm290, %v287, 0.0
      %295 = vadd.xlane.f32.xlu0 %v294
      %v296 = vpop.xlane.xlu0 %295
      %v297 = vsel %vm290, %v288, 0.0
      %298 = vadd.xlane.f32.xlu0 %v297
      %v299 = vpop.xlane.xlu0 %298
      %v300 = vsel %vm290, %v289, 0.0
      %301 = vadd.xlane.f32.xlu0 %v300
      %v302 = vpop.xlane.xlu0 %301
      %v303 = vmul.f32 %v280, %v280
      %v304 = vmul.f32 %v281, %v281
      %v305 = vrot.slane %v303, 4
      %v306 = vadd.f32 %v303, %v305
      %v307 = vrot.slane %v306, 2
      %v308 = vadd.f32 %v306, %v307
      %v309 = vrot.slane %v308, 1
      %v310 = vadd.f32 %v308, %v309
      %v311 = vrot.slane %v304, 4
      %v312 = vadd.f32 %v304, %v311
      %v313 = vrot.slane %v312, 2
      %v314 = vadd.f32 %v312, %v313
      %v315 = vrot.slane %v314, 1
      %v316 = vadd.f32 %v314, %v315
      %v318 = vsel %vm290, %v282, 0
      %v321 = vsel %vm290, %v283, 0
      %v324 = vsel %vm290, %v284, 0
      %v327 = vsel %vm290, %v285, 0
      %329 = vmatprep.subr.mxu0 %v281
      %330 = vmatpush1.msra.mxu0 %v280
      %331 = vmatprep.subr.mxu0 0.0
      %332 = vmatpush1.msra.mxu0 0.0
      %333 = vmatprep.subr.mxu0 0.0
      %334 = vmatpush1.msra.mxu0 0.0
      %335 = vmatprep.subr.mxu0 0.0
      %336 = vmatpush1.msra.mxu0 0.0
      %337 = vmatprep.subr.mxu0 0.0
      %338 = vmatpush1.msra.mxu0 0.0
      %339 = vmatprep.subr.mxu0 0.0
      %340 = vmatpush1.msra.mxu0 0.0
      %341 = vmatprep.subr.mxu0 0.0
      %342 = vmatpush1.msra.mxu0 0.0
      %343 = vmatprep.subr.mxu0 0.0
      %344 = vmatpush1.msra.mxu0 0.0
      %345 = vmatprep.subr.mxu0 0.0
      %346 = vmatpush1.msra.mxu0 0.0
      %347 = vmatprep.subr.mxu0 0.0
      %348 = vmatpush1.msra.mxu0 0.0
      %349 = vmatprep.subr.mxu0 0.0
      %350 = vmatpush1.msra.mxu0 0.0
      %351 = vmatprep.subr.mxu0 0.0
      %352 = vmatpush1.msra.mxu0 0.0
      %353 = vmatprep.subr.mxu0 0.0
      %354 = vmatpush1.msra.mxu0 0.0
      %355 = vmatprep.subr.mxu0 0.0
      %356 = vmatpush1.msra.mxu0 0.0
      %357 = vmatprep.subr.mxu0 0.0
      %358 = vmatpush1.msra.mxu0 0.0
      %359 = vmatprep.subr.mxu0 0.0
      %360 = vmatpush1.msra.mxu0 0.0
      %361 = vmatprep.subr.mxu0 0.0
      %362 = vmatpush1.msra.mxu0 0.0
      %363 = vmatprep.subr.mxu0 0.0
      %364 = vmatpush1.msra.mxu0 0.0
      %365 = vmatprep.subr.mxu0 0.0
      %366 = vmatpush1.msra.mxu0 0.0
      %367 = vmatprep.subr.mxu0 0.0
      %368 = vmatpush1.msra.mxu0 0.0
      %369 = vmatprep.subr.mxu0 0.0
      %370 = vmatpush1.msra.mxu0 0.0
      %371 = vmatprep.subr.mxu0 0.0
      %372 = vmatpush1.msra.mxu0 0.0
      %373 = vmatprep.subr.mxu0 0.0
      %374 = vmatpush1.msra.mxu0 0.0
      %375 = vmatprep.subr.mxu0 0.0
      %376 = vmatpush1.msra.mxu0 0.0
      %377 = vmatprep.subr.mxu0 0.0
      %378 = vmatpush1.msra.mxu0 0.0
      %379 = vmatprep.subr.mxu0 0.0
      %380 = vmatpush1.msra.mxu0 0.0
      %381 = vmatprep.subr.mxu0 0.0
      %382 = vmatpush1.msra.mxu0 0.0
      %383 = vmatprep.subr.mxu0 0.0
      %384 = vmatpush1.msra.mxu0 0.0
      %385 = vmatprep.subr.mxu0 0.0
      %386 = vmatpush1.msra.mxu0 0.0
      %387 = vmatprep.subr.mxu0 0.0
      %388 = vmatpush1.msra.mxu0 0.0
      %389 = vmatprep.subr.mxu0 0.0
      %390 = vmatpush1.msra.mxu0 0.0
      %391 = vmatprep.subr.mxu0 0.0
      %392 = vmatpush1.msra.mxu0 0.0
      %393 = vmatprep.mubr.f32.mxu0 0.0
      %394 = vmatmul.mubr.f32.gmra.mrb[0].mxu0 %v318
      %v395 = vpop.f32.mrb[0].mxu0
      %v396 = vadd.f32 0.0, %v395
      %v397 = vpop.f32.mrb[0].mxu0
      %v398 = vadd.f32 0.0, %v397
      %399 = vmatprep.mubr.f32.mxu0 0.0
      %400 = vmatmul.mubr.f32.gmra.mrb[0].mxu0 %v321
      %v401 = vpop.f32.mrb[0].mxu0
      %v402 = vadd.f32 0.0, %v401
      %v403 = vpop.f32.mrb[0].mxu0
      %v404 = vadd.f32 0.0, %v403
      %405 = vmatprep.mubr.f32.mxu0 0.0
      %406 = vmatmul.mubr.f32.gmra.mrb[0].mxu0 %v324
      %v407 = vpop.f32.mrb[0].mxu0
      %v408 = vadd.f32 0.0, %v407
      %v409 = vpop.f32.mrb[0].mxu0
      %v410 = vadd.f32 0.0, %v409
      %411 = vmatprep.mubr.f32.mxu0 0.0
      %412 = vmatmul.mubr.f32.gmra.mrb[0].mxu0 %v327
      %v413 = vpop.f32.mrb[0].mxu0
      %v414 = vadd.f32 0.0, %v413
      %v415 = vpop.f32.mrb[0].mxu0
      %v416 = vadd.f32 0.0, %v415
      %417 = vdwg.mxu0
      %v418 = vadd.f32 %v293, %v310
      %v419 = vadd.f32 %v293, %v316
      %v420 = vadd.f32 %v296, %v310
      %v421 = vadd.f32 %v296, %v316
      %v422 = vadd.f32 %v299, %v310
      %v423 = vadd.f32 %v299, %v316
      %v424 = vadd.f32 %v302, %v310
      %v425 = vadd.f32 %v302, %v316
      %v426 = vmul.f32 %v396, 2.0
      %v427 = vmul.f32 %v398, 2.0
      %v428 = vmul.f32 %v402, 2.0
      %v429 = vmul.f32 %v404, 2.0
      %v430 = vmul.f32 %v408, 2.0
      %v431 = vmul.f32 %v410, 2.0
      %v432 = vmul.f32 %v414, 2.0
      %v433 = vmul.f32 %v416, 2.0
      %v434 = vsub.f32 %v418, %v426
      %v435 = vsub.f32 %v419, %v427
      %v436 = vsub.f32 %v420, %v428
      %v437 = vsub.f32 %v421, %v429
      %v438 = vsub.f32 %v422, %v430
      %v439 = vsub.f32 %v423, %v431
      %v440 = vsub.f32 %v424, %v432
      %v441 = vsub.f32 %v425, %v433
      %v442 = vsub.f32 0.0, %v434
      %v443 = vsub.f32 0.0, %v435
      %v444 = vsub.f32 0.0, %v436
      %v445 = vsub.f32 0.0, %v437
      %v446 = vsub.f32 0.0, %v438
      %v447 = vsub.f32 0.0, %v439
      %v448 = vsub.f32 0.0, %v440
      %v449 = vsub.f32 0.0, %v441
      %v450 = vmax.f32 %v442, %v446
      %v451 = vmax.f32 %v444, %v448
      %v452 = vmax.f32 %v450, %v451
      %v453 = vrot.slane %v452, 4
      %v454 = vmax.f32 %v452, %v453
      %v455 = vrot.slane %v454, 2
      %v456 = vmax.f32 %v454, %v455
      %v457 = vrot.slane %v456, 1
      %v458 = vmax.f32 %v456, %v457
      %v459 = vmax.f32 %v443, %v447
      %v460 = vmax.f32 %v445, %v449
      %v461 = vmax.f32 %v459, %v460
      %v462 = vrot.slane %v461, 4
      %v463 = vmax.f32 %v461, %v462
      %v464 = vrot.slane %v463, 2
      %v465 = vmax.f32 %v463, %v464
      %v466 = vrot.slane %v465, 1
      %v467 = vmax.f32 %v465, %v466
      %v468 = vlaneseq
      %v469 = vshrl.u32 %v468, 7
      %v470 = vadd.s32 %v469, 8
      %v471 = vadd.s32 %v469, 16
      %v472 = vadd.s32 %v469, 24
      %vm473 = vcmp.eq.f32.partialorder %v442, %v458
      %vm474 = vcmp.eq.f32.partialorder %v443, %v467
      %vm475 = vcmp.eq.f32.partialorder %v444, %v458
      %vm476 = vcmp.eq.f32.partialorder %v445, %v467
      %vm477 = vcmp.eq.f32.partialorder %v446, %v458
      %vm478 = vcmp.eq.f32.partialorder %v447, %v467
      %vm479 = vcmp.eq.f32.partialorder %v448, %v458
      %vm480 = vcmp.eq.f32.partialorder %v449, %v467
      %v481 = vsel %vm473, %v469, 32
      %v482 = vsel %vm474, %v469, 32
      %v483 = vsel %vm475, %v470, 32
      %v484 = vsel %vm476, %v470, 32
      %v485 = vsel %vm477, %v471, 32
      %v486 = vsel %vm478, %v471, 32
      %v487 = vsel %vm479, %v472, 32
      %v488 = vsel %vm480, %v472, 32
      %vm489 = vcmp.lt.s32.totalorder %v481, %v485
      %v490 = vsel %vm489, %v481, %v485
      %vm491 = vcmp.lt.s32.totalorder %v483, %v487
      %v492 = vsel %vm491, %v483, %v487
      %vm493 = vcmp.lt.s32.totalorder %v490, %v492
      %v494 = vsel %vm493, %v490, %v492
      %v495 = vrot.slane %v494, 4
      %vm496 = vcmp.lt.s32.totalorder %v494, %v495
      %v497 = vsel %vm496, %v494, %v495
      %v498 = vrot.slane %v497, 2
      %vm499 = vcmp.lt.s32.totalorder %v497, %v498
      %v500 = vsel %vm499, %v497, %v498
      %v501 = vrot.slane %v500, 1
      %vm502 = vcmp.lt.s32.totalorder %v500, %v501
      %v503 = vsel %vm502, %v500, %v501
      %vm504 = vcmp.lt.s32.totalorder %v482, %v486
      %v505 = vsel %vm504, %v482, %v486
      %vm506 = vcmp.lt.s32.totalorder %v484, %v488
      %v507 = vsel %vm506, %v484, %v488
      %vm508 = vcmp.lt.s32.totalorder %v505, %v507
      %v509 = vsel %vm508, %v505, %v507
      %v510 = vrot.slane %v509, 4
      %vm511 = vcmp.lt.s32.totalorder %v509, %v510
      %v512 = vsel %vm511, %v509, %v510
      %v513 = vrot.slane %v512, 2
      %vm514 = vcmp.lt.s32.totalorder %v512, %v513
      %v515 = vsel %vm514, %v512, %v513
      %v516 = vrot.slane %v515, 1
      %vm517 = vcmp.lt.s32.totalorder %v515, %v516
      %v518 = vsel %vm517, %v515, %v516
      %v519 = vcombine.low %v503, %v518
      %v521 = vunpack.c.l.s4 1966171168
      %v522 = vunpack.c.0.s8 %v521
      %v523 = vlaneseq
      %v524 = vshrl.u32 %v523, 7
      %v525 = vsub.s32 %v522, %v524
      %v526 = vrot.slane %v519, %v525
      %v528 = vunpack.c.l.s4 1966171168
      %v529 = vunpack.c.0.s8 %v528
      %v530 = vlaneseq
      %v531 = vshrl.u32 %v530, 7
      %v532 = vsub.s32 %v529, %v531
      %v533 = vrot.slane %v526, %v532
      %v534 = vlaneseq
      %vm535 = vcmp.ge.s32.totalorder %v534, 0
      %vm536 = vcmp.lt.s32.totalorder %v534, 256
      %vm537 = vmand %vm535, %vm536
      %538 = vst.msk [vmem:[%s269] sm:$0x3] %vm537, %v533
      %vm539 = vcmp.eq.s32.totalorder %v469, %v503
      %vm540 = vcmp.eq.s32.totalorder %v469, %v518
      %vm541 = vcmp.eq.s32.totalorder %v470, %v503
      %vm542 = vcmp.eq.s32.totalorder %v470, %v518
      %vm543 = vcmp.eq.s32.totalorder %v471, %v503
      %vm544 = vcmp.eq.s32.totalorder %v471, %v518
      %vm545 = vcmp.eq.s32.totalorder %v472, %v503
      %vm546 = vcmp.eq.s32.totalorder %v472, %v518
      %v547 = vsel %vm539, 1, 0
      %v548 = vsel %vm540, 1, 0
      %v549 = vsel %vm541, 1, 0
      %v550 = vsel %vm542, 1, 0
      %v551 = vsel %vm543, 1, 0
      %v552 = vsel %vm544, 1, 0
      %v553 = vsel %vm545, 1, 0
      %v554 = vsel %vm546, 1, 0
      %v555 = vcvt.s32.f32 %v547
      %v556 = vcvt.s32.f32 %v548
      %v557 = vcvt.s32.f32 %v549
      %v558 = vcvt.s32.f32 %v550
      %v559 = vcvt.s32.f32 %v551
      %v560 = vcvt.s32.f32 %v552
      %v561 = vcvt.s32.f32 %v553
      %v562 = vcvt.s32.f32 %v554
      %563 = vxpose.xlu0.b32.start [1/16] %v282, 128
      %564 = vxpose.xlu0.b32.cont [2/16] %v283, 128
      %565 = vxpose.xlu0.b32.cont [3/16] %v284, 128
      %566 = vxpose.xlu0.b32.cont [4/16] %v285, 128
      %567 = vxpose.xlu0.b32.cont [5/16] 0.0, 128
      %568 = vxpose.xlu0.b32.cont [6/16] 0.0, 128
      %569 = vxpose.xlu0.b32.cont [7/16] 0.0, 128
      %570 = vxpose.xlu0.b32.cont [8/16] 0.0, 128
      %571 = vxpose.xlu0.b32.cont [9/16] 0.0, 128
      %572 = vxpose.xlu0.b32.cont [10/16] 0.0, 128
      %573 = vxpose.xlu0.b32.cont [11/16] 0.0, 128
      %574 = vxpose.xlu0.b32.cont [12/16] 0.0, 128
      %575 = vxpose.xlu0.b32.cont [13/16] 0.0, 128
      %576 = vxpose.xlu0.b32.cont [14/16] 0.0, 128
      %577 = vxpose.xlu0.b32.cont [15/16] 0.0, 128
      %578 = vxpose.xlu0.b32.end [16/16] 0.0, 128
      %v579 = vpop.trf.xlu0
      %v580 = vpop.trf.xlu0
      %v581 = vpop.trf.xlu0
      %v582 = vpop.trf.xlu0
      %v583 = vpop.trf.xlu0
      %v584 = vpop.trf.xlu0
      %v585 = vpop.trf.xlu0
      %v586 = vpop.trf.xlu0
      %v587 = vpop.trf.xlu0
      %v588 = vpop.trf.xlu0
      %v589 = vpop.trf.xlu0
      %v590 = vpop.trf.xlu0
      %v591 = vpop.trf.xlu0
      %v592 = vpop.trf.xlu0
      %v593 = vpop.trf.xlu0
      %v594 = vpop.trf.xlu0
      %vm595 = vcmask 261120
      %v597 = vsel %vm595, %v579, 0
      %599 = vmatprep.subr.mxu0 %v556
      %600 = vmatpush1.msra.mxu0 %v555
      %601 = vmatprep.subr.mxu0 %v558
      %602 = vmatpush1.msra.mxu0 %v557
      %603 = vmatprep.subr.mxu0 %v560
      %604 = vmatpush1.msra.mxu0 %v559
      %605 = vmatprep.subr.mxu0 %v562
      %606 = vmatpush1.msra.mxu0 %v561
      %607 = vmatprep.subr.mxu0 0.0
      %608 = vmatpush1.msra.mxu0 0.0
      %609 = vmatprep.subr.mxu0 0.0
      %610 = vmatpush1.msra.mxu0 0.0
      %611 = vmatprep.subr.mxu0 0.0
      %612 = vmatpush1.msra.mxu0 0.0
      %613 = vmatprep.subr.mxu0 0.0
      %614 = vmatpush1.msra.mxu0 0.0
      %615 = vmatprep.subr.mxu0 0.0
      %616 = vmatpush1.msra.mxu0 0.0
      %617 = vmatprep.subr.mxu0 0.0
      %618 = vmatpush1.msra.mxu0 0.0
      %619 = vmatprep.subr.mxu0 0.0
      %620 = vmatpush1.msra.mxu0 0.0
      %621 = vmatprep.subr.mxu0 0.0
      %622 = vmatpush1.msra.mxu0 0.0
      %623 = vmatprep.subr.mxu0 0.0
      %624 = vmatpush1.msra.mxu0 0.0
      %625 = vmatprep.subr.mxu0 0.0
      %626 = vmatpush1.msra.mxu0 0.0
      %627 = vmatprep.subr.mxu0 0.0
      %628 = vmatpush1.msra.mxu0 0.0
      %629 = vmatprep.subr.mxu0 0.0
      %630 = vmatpush1.msra.mxu0 0.0
      %631 = vmatprep.subr.mxu0 0.0
      %632 = vmatpush1.msra.mxu0 0.0
      %633 = vmatprep.subr.mxu0 0.0
      %634 = vmatpush1.msra.mxu0 0.0
      %635 = vmatprep.subr.mxu0 0.0
      %636 = vmatpush1.msra.mxu0 0.0
      %637 = vmatprep.subr.mxu0 0.0
      %638 = vmatpush1.msra.mxu0 0.0
      %639 = vmatprep.subr.mxu0 0.0
      %640 = vmatpush1.msra.mxu0 0.0
      %641 = vmatprep.subr.mxu0 0.0
      %642 = vmatpush1.msra.mxu0 0.0
      %643 = vmatprep.subr.mxu0 0.0
      %644 = vmatpush1.msra.mxu0 0.0
      %645 = vmatprep.subr.mxu0 0.0
      %646 = vmatpush1.msra.mxu0 0.0
      %647 = vmatprep.subr.mxu0 0.0
      %648 = vmatpush1.msra.mxu0 0.0
      %649 = vmatprep.subr.mxu0 0.0
      %650 = vmatpush1.msra.mxu0 0.0
      %651 = vmatprep.subr.mxu0 0.0
      %652 = vmatpush1.msra.mxu0 0.0
      %653 = vmatprep.subr.mxu0 0.0
      %654 = vmatpush1.msra.mxu0 0.0
      %655 = vmatprep.subr.mxu0 0.0
      %656 = vmatpush1.msra.mxu0 0.0
      %657 = vmatprep.subr.mxu0 0.0
      %658 = vmatpush1.msra.mxu0 0.0
      %659 = vmatprep.subr.mxu0 0.0
      %660 = vmatpush1.msra.mxu0 0.0
      %661 = vmatprep.subr.mxu0 0.0
      %662 = vmatpush1.msra.mxu0 0.0
      %663 = vmatprep.mubr.f32.mxu0 0.0
      %664 = vmatmul.mubr.f32.gmra.mrb[0].mxu0 %v597
      %v665 = vpop.f32.mrb[0].mxu0
      %v666 = vadd.f32 0.0, %v665
      %v667 = vpop.f32.mrb[0].mxu0
      %v668 = vadd.f32 0.0, %v667
      %669 = vdwg.mxu0
      %670 = vst [vmem:[%s260] sm:$0xff] %v666
      %671 = vst [vmem:[%s260 + $0x8] sm:$0xff] %v668
      %v672 = vsub.f32 %v666, %v280
      %v673 = vsub.f32 %v668, %v281
      %v674 = vmul.f32 %v672, %v672
      %v675 = vmul.f32 %v673, %v673
      %v676 = vrot.slane %v674, 4
      %v677 = vadd.f32 %v674, %v676
      %v678 = vrot.slane %v677, 2
      %v679 = vadd.f32 %v677, %v678
      %v680 = vrot.slane %v679, 1
      %v681 = vadd.f32 %v679, %v680
      %v682 = vrot.slane %v675, 4
      %v683 = vadd.f32 %v675, %v682
      %v684 = vrot.slane %v683, 2
      %v685 = vadd.f32 %v683, %v684
      %v686 = vrot.slane %v685, 1
      %v687 = vadd.f32 %v685, %v686
      %v690 = vcombine.low %v681, %v687
      %v692 = vunpack.c.l.s4 1966171168
      %v693 = vunpack.c.0.s8 %v692
      %v694 = vlaneseq
      %v695 = vshrl.u32 %v694, 7
      %v696 = vsub.s32 %v693, %v695
      %v697 = vrot.slane %v690, %v696
      %v699 = vunpack.c.l.s4 1966171168
      %v700 = vunpack.c.0.s8 %v699
      %v701 = vlaneseq
      %v702 = vshrl.u32 %v701, 7
      %v703 = vsub.s32 %v700, %v702
      %v704 = vrot.slane %v697, %v703
      %706 = vst.msk [vmem:[%s278] sm:$0x3] %vm537, %v704
      %s707 = smul.u32 2, %s21
      %p708 = scmp.lt.s32.totalorder %s20, 1
      %s709 = scalar_select %p708, %s20, 1
      %p710 = scmp.lt.s32.totalorder %s707, 1
      %s711 = scalar_select %p710, %s707, 1
      %s712 = smul.addr %s709, 2
      %s713 = sadd.s32 %s711, %s712
      %s714 = smul.addr %s713, 8
      %s715 = scalar_lea.vmem %s2, %s714
      %s716 = smul.u32 2, %s21
      %p717 = scmp.lt.s32.totalorder %s20, 1
      %s718 = scalar_select %p717, %s20, 1
      %p719 = scmp.lt.s32.totalorder %s716, 1
      %s720 = scalar_select %p719, %s716, 1
      %s721 = smul.addr %s718, 2
      %s722 = sadd.s32 %s720, %s721
      %s723 = scalar_lea.vmem %s3, %s722
      %s724 = smul.u32 2, %s21
      %p725 = scmp.lt.s32.totalorder %s20, 1
      %s726 = scalar_select %p725, %s20, 1
      %p727 = scmp.lt.s32.totalorder %s724, 1
      %s728 = scalar_select %p727, %s724, 1
      %s729 = smul.addr %s726, 2
      %s730 = sadd.s32 %s728, %s729
      %s731 = scalar_lea.vmem %s4, %s730
      // Predicated region
      $region29: #{vq_ema_forward.1} parent=27 // pred_check
        %p732 = pneg %p97
      $region30: #{vq_ema_forward.1} parent=27 // pred_check_branch
        %734 = sbr.rel (%p732) target = $region32
      $region31: #{vq_ema_forward.1} parent=27 // pred_region
        %s735 = smul.u32 2, %s21
      $region32: #{vq_ema_forward.1} parent=27 // pred_fallthru
        _
      // Predicated region
      $region33: #{vq_ema_forward.1} parent=27 // pred_check
        %p736 = pneg %p125
      $region34: #{vq_ema_forward.1} parent=27 // pred_check_branch
        %738 = sbr.rel (%p736) target = $region36
      $region35: #{vq_ema_forward.1} parent=27 // pred_region
        %s739 = smul.u32 2, %s21
      $region36: #{vq_ema_forward.1} parent=27 // pred_fallthru
        _
      // Predicated region
      $region37: #{vq_ema_forward.1} parent=27 // pred_check
        %p740 = pneg %p153
      $region38: #{vq_ema_forward.1} parent=27 // pred_check_branch
        %742 = sbr.rel (%p740) target = $region40
      $region39: #{vq_ema_forward.1} parent=27 // pred_region
        %s743 = smul.u32 2, %s21
      $region40: #{vq_ema_forward.1} parent=27 // pred_fallthru
        _
    $region28: #{vq_ema_forward.1} parent=5 // pred_fallthru
      _
    %p744 = scmp.le.s32.totalorder 2, %s11
    // Predicated region
    $region41: #{vq_ema_forward.1} parent=5 // pred_check
      %p745 = pneg %p744
    $region42: #{vq_ema_forward.1} parent=5 // pred_check_branch
      %747 = sbr.rel (%p745) target = $region44
    $region43: #{vq_ema_forward.1} parent=5 // pred_region
      %s748 = ssub.s32 %s11, 2
      // Predicated region
      $region45: #{vq_ema_forward.1} parent=43 // pred_check
        %p749 = pneg %p103
      $region46: #{vq_ema_forward.1} parent=43 // pred_check_branch
        %751 = sbr.rel (%p749) target = $region48
      $region47: #{vq_ema_forward.1} parent=43 // pred_region
        %s752 = smul.u32 2, %s23
        %p753 = scmp.lt.s32.totalorder %s22, 1
        %s754 = scalar_select %p753, %s22, 1
        %p755 = scmp.lt.s32.totalorder %s752, 1
        %s756 = scalar_select %p755, %s752, 1
        %s757 = smul.addr %s754, 2
        %s758 = sadd.s32 %s756, %s757
        %s759 = smul.addr %s758, 8
        %s760 = scalar_lea.vmem %s2, %s759
      $region48: #{vq_ema_forward.1} parent=43 // pred_fallthru
        _
      // Predicated region
      $region49: #{vq_ema_forward.1} parent=43 // pred_check
        %p761 = pneg %p131
      $region50: #{vq_ema_forward.1} parent=43 // pred_check_branch
        %763 = sbr.rel (%p761) target = $region52
      $region51: #{vq_ema_forward.1} parent=43 // pred_region
        %s764 = smul.u32 2, %s23
        %p765 = scmp.lt.s32.totalorder %s22, 1
        %s766 = scalar_select %p765, %s22, 1
        %p767 = scmp.lt.s32.totalorder %s764, 1
        %s768 = scalar_select %p767, %s764, 1
        %s769 = smul.addr %s766, 2
        %s770 = sadd.s32 %s768, %s769
        %s771 = scalar_lea.vmem %s3, %s770
      $region52: #{vq_ema_forward.1} parent=43 // pred_fallthru
        _
      // Predicated region
      $region53: #{vq_ema_forward.1} parent=43 // pred_check
        %p772 = pneg %p159
      $region54: #{vq_ema_forward.1} parent=43 // pred_check_branch
        %774 = sbr.rel (%p772) target = $region56
      $region55: #{vq_ema_forward.1} parent=43 // pred_region
        %s775 = smul.u32 2, %s23
        %p776 = scmp.lt.s32.totalorder %s22, 1
        %s777 = scalar_select %p776, %s22, 1
        %p778 = scmp.lt.s32.totalorder %s775, 1
        %s779 = scalar_select %p778, %s775, 1
        %s780 = smul.addr %s777, 2
        %s781 = sadd.s32 %s779, %s780
        %s782 = scalar_lea.vmem %s4, %s781
      $region56: #{vq_ema_forward.1} parent=43 // pred_fallthru
        _
    $region44: #{vq_ema_forward.1} parent=5 // pred_fallthru
      _
  $region6: #{vq_ema_forward.1} parent=0 // loop_footer
    %s15 = sadd.s32 1, %s11
  $region7: #{vq_ema_forward.1} parent=0 // loop_footer_branch
    %10 = sbr.rel target = $region3
  $region8: #{vq_ema_forward.1} parent=0 // loop_exit
    _

</llo_original>
